<compile_context>
chip_gen: v7x
topology: tpu7x:2x2x1
jax: 0.10.0
libtpu: 0.0.40
codegen_flags: <defaults>
</compile_context>

<pallas_src>
import jax
import jax.numpy as jnp
from jax.experimental import pallas as pl
from jax.experimental.pallas import tpu as pltpu

LANE = 128
_SINGLE_BLOCK_BYTES = 512 * 1024  # above this, force >= 2 grid steps


def _h_sigmoid_math(x):
    # relu6(x + 3) / 6.  Python-float constants are weakly typed, so bf16/f16
    # inputs stay in their own dtype.  Multiplying by (1/6) instead of
    # dividing by 6 differs from the torch reference by <= 1 ulp mid-range;
    # the saturation endpoints 0 and 1 stay exact.
    return jnp.clip(x + 3.0, 0.0, 6.0) * (1.0 / 6.0)


def _h_sigmoid_kernel(x_ref, o_ref):
    o_ref[...] = _h_sigmoid_math(x_ref[...]).astype(o_ref.dtype)


def _h_sigmoid_ref(x):
    return jnp.clip(x + 3.0, 0.0, 6.0) / 6.0


def _default_tile_bytes():
    """2 MiB tile class on v5e-and-older (16 MiB default scoped VMEM),
    4 MiB on v6e/v7x (32 MiB default)."""
    try:
        kind = jax.devices()[0].device_kind.lower()
    except Exception:
        return 2 * 1024 * 1024
    if any(v in kind for v in ("v2", "v3", "v4", "v5")):
        return 2 * 1024 * 1024
    return 4 * 1024 * 1024


def _sublane_quantum(dtype):
    # 8 rows for 4-byte, 16 for 2-byte, 32 for 1-byte dtypes.
    itemsize = jnp.dtype(dtype).itemsize
    return max(32 // itemsize, 8)


def _pick_tile_rows(rows, q, target_rows):
    """Tile height <= target_rows, multiple of q, guaranteeing >= 2 grid steps.
    Prefers an evenly-dividing tile, and an even step count so the parallel
    grid axis splits evenly across v7x's two TensorCores."""
    half = max(q, (rows // 2) // q * q)        # cdiv(rows, tr) >= 2
    hi = max(q, min(target_rows, half))
    lo = max(q, hi // 2)                       # never collapse to tiny tiles
    best, best_score = hi, -1
    cand = hi
    while cand >= lo:
        steps = -(-rows // cand)
        score = (2 if rows % cand == 0 else 0) + (1 if steps % 2 == 0 else 0)
        if score > best_score:
            best, best_score = cand, score
            if score == 3:
                break
        cand -= q
    return best


def h_sigmoid(x, *, target_tile_bytes=None, donate_input=False):
    """Elementwise hard-sigmoid on an arbitrary-shape/dtype array (NCHW typical)."""
    orig_shape = x.shape
    dtype = x.dtype
    flat = x.reshape(-1)
    n = flat.shape[0]
    if n == 0:
        return x

    if target_tile_bytes is None:
        target_tile_bytes = _default_tile_bytes()

    itemsize = jnp.dtype(dtype).itemsize
    q = _sublane_quantum(dtype)
    n_bytes = n * itemsize
    single_block_limit = min(_SINGLE_BLOCK_BYTES, target_tile_bytes)

    cost = pl.CostEstimate(flops=3 * n, transcendentals=0,
                           bytes_accessed=2 * n_bytes)
    io_alias = {0: 0} if donate_input else {}
    cparams = pltpu.CompilerParams(dimension_semantics=("parallel",))

    if n % LANE == 0:
        # ---------- aligned path: lane-dense 2-D slab (rows, W) ----------
        W = LANE
        for cand in (2048, 1024, 512, 256, 128):
            if n % cand == 0 and (n // cand) >= q:
                W = cand
                break
        rows = n // W
        slab = flat.reshape(rows, W)

        row_bytes = W * itemsize
        target_rows = max((target_tile_bytes // row_bytes) // q * q, q)

        if n_bytes <= single_block_limit or rows < 2 * q:
            # Tiny slab: one full-array block (always layout-legal), no
            # pipeline overhead to pay for.
            tr = rows
        else:
            tr = _pick_tile_rows(rows, q, target_rows)
        grid = (pl.cdiv(rows, tr),)

        out_slab = pl.pallas_call(
            _h_sigmoid_kernel,
            out_shape=jax.ShapeDtypeStruct((rows, W), dtype),
            grid_spec=pltpu.PrefetchScalarGridSpec(
                num_scalar_prefetch=0,
                grid=grid,
                in_specs=[pl.BlockSpec((tr, W), lambda i: (i, 0))],
                out_specs=pl.BlockSpec((tr, W), lambda i: (i, 0)),
            ),
            compiler_params=cparams,
            cost_estimate=cost,
            input_output_aliases=io_alias,
        )(slab)
        return out_slab.reshape(orig_shape)

    # ---------- ragged path (n % 128 != 0): one masked 1-D pallas_call ----------
    # No slice / pad / concatenate HBM copies.  The final block is partial:
    # Pallas masks its output store; OOB input values only feed the
    # elementwise body and are never written back.
    unit = q * LANE
    if n < 2 * unit or n_bytes <= single_block_limit:
        blk = n                                  # full-array single block
    else:
        blk_target = max(unit, (target_tile_bytes // itemsize) // unit * unit)
        blk = max(unit, min(blk_target, (n // 2) // unit * unit))  # >= 2 steps
    grid = (pl.cdiv(n, blk),)

    out_flat = pl.pallas_call(
        _h_sigmoid_kernel,
        out_shape=jax.ShapeDtypeStruct((n,), dtype),
        grid_spec=pltpu.PrefetchScalarGridSpec(
            num_scalar_prefetch=0,
            grid=grid,
            in_specs=[pl.BlockSpec((blk,), lambda i: (i,))],
            out_specs=pl.BlockSpec((blk,), lambda i: (i,)),
        ),
        compiler_params=cparams,
        cost_estimate=cost,
        input_output_aliases=io_alias,
    )(flat)
    return out_flat.reshape(orig_shape)


if __name__ == "__main__":
    key = jax.random.PRNGKey(0)
    k1, k2, k3, k4, k5, k6 = jax.random.split(key, 6)

    # Primary case: small NCHW f32 tensor (typical h_sigmoid usage in conv nets).
    x = jax.random.normal(k1, (2, 4, 16, 16), dtype=jnp.float32) * 4.0
    y = jax.block_until_ready(h_sigmoid(x))
    assert y.shape == x.shape and y.dtype == x.dtype
    assert jnp.allclose(y, _h_sigmoid_ref(x), atol=1e-6, rtol=1e-6)

    # Ragged size (not a multiple of 128): single full-array 1-D block, no copies.
    x2 = jax.random.normal(k2, (3, 5, 7, 11), dtype=jnp.float32) * 4.0
    y2 = jax.block_until_ready(h_sigmoid(x2))
    assert jnp.allclose(y2, _h_sigmoid_ref(x2), atol=1e-6, rtol=1e-6)

    # Ragged + forced multi-block: exercises the masked partial-final-block path.
    x3 = jax.random.normal(k3, (3, 5, 7, 11, 3), dtype=jnp.float32) * 4.0
    y3 = jax.block_until_ready(h_sigmoid(x3, target_tile_bytes=8 * 1024))
    assert jnp.allclose(y3, _h_sigmoid_ref(x3), atol=1e-6, rtol=1e-6)

    # bf16: dtype-aware sublane quantum (16 rows), compute stays in bf16.
    x4 = (jax.random.normal(k4, (2, 4, 16, 16), dtype=jnp.float32) * 4.0
          ).astype(jnp.bfloat16)
    y4 = jax.block_until_ready(h_sigmoid(x4))
    assert y4.dtype == jnp.bfloat16
    assert jnp.allclose(y4.astype(jnp.float32),
                        _h_sigmoid_ref(x4).astype(jnp.float32), atol=2e-2)

    # Aligned multi-block via small tile override (even-step, evenly-dividing grid).
    x5 = jax.random.normal(k5, (2, 4, 128, 128), dtype=jnp.float32) * 4.0
    y5 = jax.block_until_ready(h_sigmoid(x5, target_tile_bytes=64 * 1024))
    assert jnp.allclose(y5, _h_sigmoid_ref(x5), atol=1e-6, rtol=1e-6)

    # Aligned multi-block with default tile class (>512 KiB slab -> >=2 steps).
    x6 = jax.random.normal(k6, (2, 8, 128, 128), dtype=jnp.float32) * 4.0
    y6 = jax.block_until_ready(h_sigmoid(x6))
    assert jnp.allclose(y6, _h_sigmoid_ref(x6), atol=1e-6, rtol=1e-6)

    print("KERNEL_OK")
</pallas_src>

<mosaic_0001>
module attributes {stable_mosaic.version = 11 : i64} {
  func.func @_h_sigmoid_kernel(%arg0: i32, %arg1: memref<8x256xf32, #tpu.memory_space<vmem>>, %arg2: memref<8x256xf32, #tpu.memory_space<vmem>>) attributes {dimension_semantics = [#tpu.dimension_semantics<parallel>], iteration_bounds = array<i64: 1>, scalar_prefetch = 0 : i64, scratch_operands = 0 : i64, tpu.core_type = #tpu.core_type<tc>, window_params = [{transform_indices = @transform_0, window_bounds = array<i64: 8, 256>}, {transform_indices = @transform_1, window_bounds = array<i64: 8, 256>}]} {
    %c0 = arith.constant 0 : index
    %c0_0 = arith.constant 0 : index
    %0 = vector.load %arg1[%c0, %c0_0] : memref<8x256xf32, #tpu.memory_space<vmem>>, vector<8x256xf32>
    %cst = arith.constant 3.000000e+00 : f32
    %1 = vector.broadcast %cst : f32 to vector<8x256xf32>
    %2 = arith.addf %0, %1 : vector<8x256xf32>
    %cst_1 = arith.constant 0.000000e+00 : f32
    %cst_2 = arith.constant 6.000000e+00 : f32
    %3 = vector.broadcast %cst_1 : f32 to vector<8x256xf32>
    %4 = arith.maximumf %3, %2 : vector<8x256xf32>
    %5 = vector.broadcast %cst_2 : f32 to vector<8x256xf32>
    %6 = arith.minimumf %5, %4 : vector<8x256xf32>
    %cst_3 = arith.constant 0.166666672 : f32
    %7 = vector.broadcast %cst_3 : f32 to vector<8x256xf32>
    %8 = arith.mulf %6, %7 : vector<8x256xf32>
    %c0_4 = arith.constant 0 : index
    %c0_5 = arith.constant 0 : index
    %9 = vector.load %arg2[%c0_4, %c0_5] : memref<8x256xf32, #tpu.memory_space<vmem>>, vector<8x256xf32>
    tpu.vector_store %arg2[%c0_4, %c0_5], %8 {strides = array<i32>} : memref<8x256xf32, #tpu.memory_space<vmem>>, vector<8x256xf32>,
    return
  }
  func.func @transform_0(%arg0: i32) -> (i32, i32) {
    %c0_i32 = arith.constant 0 : i32
    %c0_i32_0 = arith.constant 0 : i32
    return %arg0, %c0_i32 : i32, i32
  }
  func.func @transform_1(%arg0: i32) -> (i32, i32) {
    %c0_i32 = arith.constant 0 : i32
    %c0_i32_0 = arith.constant 0 : i32
    return %arg0, %c0_i32 : i32, i32
  }
}

</mosaic_0001>

<llo_original>
// kernel: tpu_custom_call.1
$region0: #{tpu_custom_call.1}
  #allocation0 [shape = 'u32[]', space=smem, size = 0x4, offset = 0x4, fixed_abs, tag = 'smem constant byte address 0x4 - core index']
  #allocation1 [shape = 'u32[144,128]{1,0:T(1,128)}', space=vmem, size = 0x12000, scoped, tag = 'internal scratch']
  %s0 = inlined_call_operand.hbm [shape: f32[8,256], index: 0, kind: input, shape index: {}]
  %s1 = inlined_call_operand.hbm [shape: f32[8,256], index: 1, kind: output, shape index: {}]
  %s2 = sld [smem:[#allocation0]]
  $region18: #{tpu_custom_call.1} parent=0
    _
  %s4 = ssub.s32 1, %s2
  %s5 = scalar_select 0, %s4, %s2
  $region1: #{tpu_custom_call.1} parent=0
    #allocation2 [shape = 'u8[8192]{0}', space=vmem, size = 0x2000, scoped, tag = 'input window, operand 0, single buffered']
    #allocation3 [shape = 's32[1]{0}', space=sflag, size = 0x4, scoped, tag = 'scoped memory for tpu_custom_call.1']
    #allocation4 [shape = 's32[1]{0}', space=sflag, size = 0x4, scoped, tag = 'scoped memory for tpu_custom_call.1']
    #allocation5 [shape = 'u8[8192]{0}', space=vmem, size = 0x2000, scoped, tag = 'output window, operand 0, single buffered']
    %6 = vsyncpa [#allocation3], 0
    %7 = vsyncpa [#allocation4], 0
    // Predicated region
    $region2: #{tpu_custom_call.1} parent=1 // pred_check
      _
    $region3: #{tpu_custom_call.1} parent=1 // pred_check_branch
      %9 = sbr.rel (0) target = $region5
    $region4: #{tpu_custom_call.1} parent=1 // pred_region
      %s11 = ssub.s32 256, 256
      %12 = vsyncadd [#allocation3], %s11
      %s14 = sshll.u32 [#allocation2], 4
      %s15 = int_to_ptr.vmem [resolvable:$true] %s14
      %17 = dma.hbm_to_vmem [thread:$0]  %s0, 256, %s15, [#allocation3]
    $region5: #{tpu_custom_call.1} parent=1 // pred_fallthru
      _
    // Predicated region
    $region6: #{tpu_custom_call.1} parent=1 // pred_check
      _
    $region7: #{tpu_custom_call.1} parent=1 // pred_check_branch
      %19 = sbr.rel (0) target = $region9
    $region8: #{tpu_custom_call.1} parent=1 // pred_region
      %20 = dma.done [#allocation3], 256
    $region9: #{tpu_custom_call.1} parent=1 // pred_fallthru
      _
    %v21 = vld [vmem:[#allocation2] sm:$0xff]
    %v22 = vld [vmem:[#allocation2 + $0x8] sm:$0xff]
    %v23 = vadd.f32 %v21, 3.0
    %v24 = vadd.f32 %v22, 3.0
    %v25 = vmax.f32 %v23, 0.0
    %v26 = vmax.f32 %v24, 0.0
    %v27 = vmin.f32 %v25, 6.0
    %v28 = vmin.f32 %v26, 6.0
    %v29 = vmul.f32 %v27, 0.16666667
    %v30 = vmul.f32 %v28, 0.16666667
    %31 = vst [vmem:[#allocation5] sm:$0xff] %v29
    %32 = vst [vmem:[#allocation5 + $0x8] sm:$0xff] %v30
    // Predicated region
    $region10: #{tpu_custom_call.1} parent=1 // pred_check
      _
    $region11: #{tpu_custom_call.1} parent=1 // pred_check_branch
      %34 = sbr.rel (0) target = $region13
    $region12: #{tpu_custom_call.1} parent=1 // pred_region
      %s36 = ssub.s32 256, 256
      %37 = vsyncadd [#allocation4], %s36
      %s39 = sshll.u32 [#allocation5], 4
      %s40 = int_to_ptr.vmem [resolvable:$true] %s39
      %42 = dma.vmem_to_hbm [thread:$0]  %s40, 256, %s1, [#allocation4]
    $region13: #{tpu_custom_call.1} parent=1 // pred_fallthru
      _
    // Predicated region
    $region14: #{tpu_custom_call.1} parent=1 // pred_check
      _
    $region15: #{tpu_custom_call.1} parent=1 // pred_check_branch
      %44 = sbr.rel (0) target = $region17
    $region16: #{tpu_custom_call.1} parent=1 // pred_region
      %45 = dma.done [#allocation4], 256
    $region17: #{tpu_custom_call.1} parent=1 // pred_fallthru
      _
    %46 = vsyncpa [#allocation3], 1
    %47 = vsyncpa [#allocation4], 1

</llo_original>
